<compile_context>
chip_gen: v6e
topology: v6e:2x2x1
jax: 0.10.0
libtpu: 0.0.40
codegen_flags: <defaults>
</compile_context>

<pallas_src>
import jax
import jax.numpy as jnp
from jax.experimental import pallas as pl
from jax.experimental.pallas import tpu as pltpu


def _round_up(n, m):
    return ((n + m - 1) // m) * m


def _cdiv(a, b):
    return -(-a // b)


def _round_lane(n):
    # v6e/v7x MXUs are 256-wide (2x256^2); use 256 granularity once the dim
    # is large, else 128 (perfect for v5e's 128^2 arrays and cheapest pad).
    return _round_up(n, 256 if n > 256 else 128)


def _vmem_capacity_bytes():
    try:
        return int(pltpu.get_tpu_info().vmem_capacity_bytes)
    except Exception:
        return 64 * 1024 * 1024  # conservative fallback (v7x per-TC VMEM)


def encoder_kernel(x_ref, w1_ref, b1_ref, w2_ref, b2_ref, wh_ref, bh_ref,
                   out_ref):
    # Matmuls hit the MXU with f32 accumulation; bias add on the VPU; tanh on
    # the EUP. The epilogue stays f32 even if the dot inputs are bf16.
    cdt = w1_ref.dtype
    x = x_ref[...].astype(cdt)
    h = jnp.tanh(jnp.dot(x, w1_ref[...],
                         preferred_element_type=jnp.float32) + b1_ref[...])
    h = jnp.tanh(jnp.dot(h.astype(cdt), w2_ref[...],
                         preferred_element_type=jnp.float32) + b2_ref[...])
    # Fused mu||logvar head: one lane-dense matmul, one unmasked store.
    out_ref[...] = (jnp.dot(h.astype(cdt), wh_ref[...],
                            preferred_element_type=jnp.float32)
                    + bh_ref[...]).astype(out_ref.dtype)


def encoder_forward(x, params, *, batch_tile=512, compute_dtype=jnp.float32):
    """x: [B, x_dim] float32 -> (mu [B, z_dim], logvar [B, z_dim])."""
    w1, b1, w2, b2, w21, b21, w22, b22 = params
    B, x_dim = x.shape
    h_dim = w1.shape[1]
    z_dim = w21.shape[1]

    cdt = jnp.dtype(compute_dtype)

    # Lane-pad ONLY the weight/bias output dims (done once; keeps MXU tiles
    # full and the kernel's stores lane-dense). x keeps its true K dim.
    Hp = _round_lane(h_dim)
    Zp = _round_lane(2 * z_dim)

    def pad2(a, shape, dtype):
        out = jnp.zeros(shape, dtype)
        return out.at[: a.shape[0], : a.shape[1]].set(a.astype(dtype))

    w1p = pad2(w1, (x_dim, Hp), cdt)
    w2p = pad2(w2, (Hp, Hp), cdt)
    whp = pad2(jnp.concatenate([w21, w22], axis=1), (Hp, Zp), cdt)   # W21||W22
    b1p = pad2(b1, (1, Hp), jnp.float32)
    b2p = pad2(b2, (1, Hp), jnp.float32)
    bhp = pad2(jnp.concatenate([b21, b22], axis=1), (1, Zp), jnp.float32)

    # Batch tiling: multiple of 8 (16 for bf16 sublane packing); cap so there
    # are >= 2 grid steps whenever B allows it (v7x megacore sharding of the
    # "parallel" axis). Ragged last block is handled by Pallas (OOB writes
    # dropped), so x is NOT padded/copied in HBM.
    sub = 16 if cdt == jnp.dtype(jnp.bfloat16) else 8
    tb = min(int(batch_tile), _round_up(B, sub))
    if B >= 2 * sub:
        tb = min(tb, _round_up(_cdiv(B, 2), sub))
    tb = _round_up(max(tb, sub), sub)
    nb = _cdiv(B, tb)

    itemsize = cdt.itemsize
    x_itemsize = jnp.dtype(x.dtype).itemsize
    weight_bytes = ((x_dim * Hp + Hp * Hp + Hp * Zp) * itemsize
                    + (2 * Hp + Zp) * 4)
    act_tile_bytes = tb * x_dim * x_itemsize + tb * Zp * 4   # x tile + out tile
    interm_bytes = 2 * tb * Hp * 4                           # in-kernel h (f32)
    # Weights (constant index_map) are single-buffered; only x/out tiles are
    # double-buffered. Add 1 MiB slack; clamp to ~75% of physical VMEM for
    # this generation (compiler scratch headroom).
    vmem_need = weight_bytes + 2 * act_tile_bytes + interm_bytes + (1 << 20)
    vmem_cap = int(0.75 * _vmem_capacity_bytes())
    vmem_limit = int(min(max(vmem_need, 16 * 1024 * 1024), vmem_cap))

    cost = pl.CostEstimate(
        flops=2 * B * (x_dim * Hp + Hp * Hp + Hp * Zp),
        transcendentals=2 * B * Hp,
        bytes_accessed=B * x_dim * x_itemsize + weight_bytes + B * Zp * 4,
    )

    wmap = lambda i: (0, 0)  # weights/biases: same block every grid step
    out = pl.pallas_call(
        encoder_kernel,
        out_shape=jax.ShapeDtypeStruct((B, Zp), jnp.float32),
        grid=(nb,),
        in_specs=[
            pl.BlockSpec((tb, x_dim), lambda i: (i, 0)),  # x tile (true K dim)
            pl.BlockSpec((x_dim, Hp), wmap),              # W1
            pl.BlockSpec((1, Hp), wmap),                  # b1
            pl.BlockSpec((Hp, Hp), wmap),                 # W2
            pl.BlockSpec((1, Hp), wmap),                  # b2
            pl.BlockSpec((Hp, Zp), wmap),                 # W_head (W21||W22)
            pl.BlockSpec((1, Zp), wmap),                  # b_head (b21||b22)
        ],
        out_specs=pl.BlockSpec((tb, Zp), lambda i: (i, 0)),
        compiler_params=pltpu.CompilerParams(
            dimension_semantics=("parallel",),
            vmem_limit_bytes=vmem_limit,
        ),
        cost_estimate=cost,
    )(x, w1p, b1p, w2p, b2p, whp, bhp)

    mu = out[:, :z_dim]
    logvar = out[:, z_dim:2 * z_dim]
    return mu, logvar


def init_params(key, x_dim, h_dim, z_dim):
    """Deterministic parameter init (Kaiming-uniform-ish, like nn.Linear)."""
    def linear(k, fan_in, fan_out):
        k1, k2 = jax.random.split(k)
        bound = 1.0 / jnp.sqrt(fan_in)
        # stored as [in, out] so the kernel does x @ W (== x @ W_pt.T)
        w = jax.random.uniform(k1, (fan_in, fan_out), jnp.float32, -bound, bound)
        b = jax.random.uniform(k2, (1, fan_out), jnp.float32, -bound, bound)
        return w, b

    k1, k2, k3, k4 = jax.random.split(key, 4)
    w1, b1 = linear(k1, x_dim, h_dim)
    w2, b2 = linear(k2, h_dim, h_dim)
    w21, b21 = linear(k3, h_dim, z_dim)
    w22, b22 = linear(k4, h_dim, z_dim)
    return (w1, b1, w2, b2, w21, b21, w22, b22)


def encoder_ref(x, params):
    """Pure-JAX reference for correctness check."""
    w1, b1, w2, b2, w21, b21, w22, b22 = params
    h = jnp.tanh(x @ w1 + b1)
    h = jnp.tanh(h @ w2 + b2)
    return h @ w21 + b21, h @ w22 + b22


if __name__ == "__main__":
    B, x_dim, h_dim, z_dim = 8, 32, 32, 16

    key = jax.random.PRNGKey(0)
    kx, kp = jax.random.split(key)
    x = jax.random.normal(kx, (B, x_dim), jnp.float32)
    params = init_params(kp, x_dim, h_dim, z_dim)

    mu, logvar = jax.jit(encoder_forward)(x, params)
    mu = jax.block_until_ready(mu)
    logvar = jax.block_until_ready(logvar)

    mu_ref, logvar_ref = encoder_ref(x, params)
    assert mu.shape == (B, z_dim) and logvar.shape == (B, z_dim)
    assert jnp.allclose(mu, mu_ref, atol=1e-5, rtol=1e-5)
    assert jnp.allclose(logvar, logvar_ref, atol=1e-5, rtol=1e-5)

    print("KERNEL_OK")
</pallas_src>

<mosaic_0001>
module attributes {stable_mosaic.version = 11 : i64} {
  func.func @encoder_kernel(%arg0: i32, %arg1: memref<8x32xf32, #tpu.memory_space<vmem>>, %arg2: memref<32x128xf32, #tpu.memory_space<vmem>>, %arg3: memref<1x128xf32, #tpu.memory_space<vmem>>, %arg4: memref<128x128xf32, #tpu.memory_space<vmem>>, %arg5: memref<1x128xf32, #tpu.memory_space<vmem>>, %arg6: memref<128x128xf32, #tpu.memory_space<vmem>>, %arg7: memref<1x128xf32, #tpu.memory_space<vmem>>, %arg8: memref<8x128xf32, #tpu.memory_space<vmem>>) attributes {dimension_semantics = [#tpu.dimension_semantics<parallel>], iteration_bounds = array<i64: 1>, scalar_prefetch = 0 : i64, scratch_operands = 0 : i64, tpu.core_type = #tpu.core_type<tc>, window_params = [{transform_indices = @transform_0, window_bounds = array<i64: 8, 32>}, {pipeline_mode = #tpu.pipeline_mode<synchronous>, transform_indices = @transform_1, window_bounds = array<i64: 32, 128>}, {pipeline_mode = #tpu.pipeline_mode<synchronous>, transform_indices = @transform_2, window_bounds = array<i64: 1, 128>}, {pipeline_mode = #tpu.pipeline_mode<synchronous>, transform_indices = @transform_3, window_bounds = array<i64: 128, 128>}, {pipeline_mode = #tpu.pipeline_mode<synchronous>, transform_indices = @transform_4, window_bounds = array<i64: 1, 128>}, {pipeline_mode = #tpu.pipeline_mode<synchronous>, transform_indices = @transform_5, window_bounds = array<i64: 128, 128>}, {pipeline_mode = #tpu.pipeline_mode<synchronous>, transform_indices = @transform_6, window_bounds = array<i64: 1, 128>}, {transform_indices = @transform_7, window_bounds = array<i64: 8, 128>}]} {
    %c0 = arith.constant 0 : index
    %c0_0 = arith.constant 0 : index
    %0 = vector.load %arg1[%c0, %c0_0] : memref<8x32xf32, #tpu.memory_space<vmem>>, vector<8x32xf32>
    %c0_1 = arith.constant 0 : index
    %c0_2 = arith.constant 0 : index
    %1 = vector.load %arg2[%c0_1, %c0_2] : memref<32x128xf32, #tpu.memory_space<vmem>>, vector<32x128xf32>
    %cst = arith.constant dense<0.000000e+00> : vector<8x128xf32>
    %2 = tpu.matmul %0, %1, %cst {dimension_numbers = #tpu.dot_dimension_numbers<[1], [0], [0], [1], [0, 0, 1, 1], [], []>} : vector<8x32xf32>, vector<32x128xf32>, vector<8x128xf32> -> vector<8x128xf32>
    %c0_3 = arith.constant 0 : index
    %c0_4 = arith.constant 0 : index
    %3 = vector.load %arg3[%c0_3, %c0_4] : memref<1x128xf32, #tpu.memory_space<vmem>>, vector<1x128xf32>
    %4 = vector.broadcast %3 : vector<1x128xf32> to vector<8x128xf32>
    %5 = arith.addf %2, %4 : vector<8x128xf32>
    %6 = math.tanh %5 : vector<8x128xf32>
    %c0_5 = arith.constant 0 : index
    %c0_6 = arith.constant 0 : index
    %7 = vector.load %arg4[%c0_5, %c0_6] : memref<128x128xf32, #tpu.memory_space<vmem>>, vector<128x128xf32>
    %cst_7 = arith.constant dense<0.000000e+00> : vector<8x128xf32>
    %8 = tpu.matmul %6, %7, %cst_7 {dimension_numbers = #tpu.dot_dimension_numbers<[1], [0], [0], [1], [0, 0, 1, 1], [], []>} : vector<8x128xf32>, vector<128x128xf32>, vector<8x128xf32> -> vector<8x128xf32>
    %c0_8 = arith.constant 0 : index
    %c0_9 = arith.constant 0 : index
    %9 = vector.load %arg5[%c0_8, %c0_9] : memref<1x128xf32, #tpu.memory_space<vmem>>, vector<1x128xf32>
    %10 = vector.broadcast %9 : vector<1x128xf32> to vector<8x128xf32>
    %11 = arith.addf %8, %10 : vector<8x128xf32>
    %12 = math.tanh %11 : vector<8x128xf32>
    %c0_10 = arith.constant 0 : index
    %c0_11 = arith.constant 0 : index
    %13 = vector.load %arg6[%c0_10, %c0_11] : memref<128x128xf32, #tpu.memory_space<vmem>>, vector<128x128xf32>
    %cst_12 = arith.constant dense<0.000000e+00> : vector<8x128xf32>
    %14 = tpu.matmul %12, %13, %cst_12 {dimension_numbers = #tpu.dot_dimension_numbers<[1], [0], [0], [1], [0, 0, 1, 1], [], []>} : vector<8x128xf32>, vector<128x128xf32>, vector<8x128xf32> -> vector<8x128xf32>
    %c0_13 = arith.constant 0 : index
    %c0_14 = arith.constant 0 : index
    %15 = vector.load %arg7[%c0_13, %c0_14] : memref<1x128xf32, #tpu.memory_space<vmem>>, vector<1x128xf32>
    %16 = vector.broadcast %15 : vector<1x128xf32> to vector<8x128xf32>
    %17 = arith.addf %14, %16 : vector<8x128xf32>
    %c0_15 = arith.constant 0 : index
    %c0_16 = arith.constant 0 : index
    %18 = vector.load %arg8[%c0_15, %c0_16] : memref<8x128xf32, #tpu.memory_space<vmem>>, vector<8x128xf32>
    tpu.vector_store %arg8[%c0_15, %c0_16], %17 {strides = array<i32>} : memref<8x128xf32, #tpu.memory_space<vmem>>, vector<8x128xf32>,
    return
  }
  func.func @transform_0(%arg0: i32) -> (i32, i32) {
    %c0_i32 = arith.constant 0 : i32
    %c0_i32_0 = arith.constant 0 : i32
    return %arg0, %c0_i32 : i32, i32
  }
  func.func @transform_1(%arg0: i32) -> (i32, i32) {
    %c0_i32 = arith.constant 0 : i32
    %c0_i32_0 = arith.constant 0 : i32
    %c0_i32_1 = arith.constant 0 : i32
    return %c0_i32, %c0_i32_0 : i32, i32
  }
  func.func @transform_2(%arg0: i32) -> (i32, i32) {
    %c0_i32 = arith.constant 0 : i32
    %c0_i32_0 = arith.constant 0 : i32
    %c0_i32_1 = arith.constant 0 : i32
    return %c0_i32, %c0_i32_0 : i32, i32
  }
  func.func @transform_3(%arg0: i32) -> (i32, i32) {
    %c0_i32 = arith.constant 0 : i32
    %c0_i32_0 = arith.constant 0 : i32
    %c0_i32_1 = arith.constant 0 : i32
    return %c0_i32, %c0_i32_0 : i32, i32
  }
  func.func @transform_4(%arg0: i32) -> (i32, i32) {
    %c0_i32 = arith.constant 0 : i32
    %c0_i32_0 = arith.constant 0 : i32
    %c0_i32_1 = arith.constant 0 : i32
    return %c0_i32, %c0_i32_0 : i32, i32
  }
  func.func @transform_5(%arg0: i32) -> (i32, i32) {
    %c0_i32 = arith.constant 0 : i32
    %c0_i32_0 = arith.constant 0 : i32
    %c0_i32_1 = arith.constant 0 : i32
    return %c0_i32, %c0_i32_0 : i32, i32
  }
  func.func @transform_6(%arg0: i32) -> (i32, i32) {
    %c0_i32 = arith.constant 0 : i32
    %c0_i32_0 = arith.constant 0 : i32
    %c0_i32_1 = arith.constant 0 : i32
    return %c0_i32, %c0_i32_0 : i32, i32
  }
  func.func @transform_7(%arg0: i32) -> (i32, i32) {
    %c0_i32 = arith.constant 0 : i32
    %c0_i32_0 = arith.constant 0 : i32
    return %arg0, %c0_i32 : i32, i32
  }
}

</mosaic_0001>

<llo_original>
// kernel: encoder_forward.1
$region0: #{encoder_forward.1}
  #allocation0 [shape = 'u32[]', space=smem, size = 0x4, offset = 0x4, fixed_abs, tag = 'smem constant byte address 0x4 - core index']
  #allocation1 [shape = 'u32[144,128]{1,0:T(1,128)}', space=vmem, size = 0x12000, scoped, tag = 'internal scratch']
  %s0 = inlined_call_operand.vmem [shape: f32[8,32], index: 0, kind: input, shape index: {}]
  %s1 = inlined_call_operand.vmem [shape: f32[32,128], index: 1, kind: input, shape index: {}]
  %s2 = inlined_call_operand.vmem [shape: f32[1,128], index: 2, kind: input, shape index: {}]
  %s3 = inlined_call_operand.vmem [shape: f32[128,128], index: 3, kind: input, shape index: {}]
  %s4 = inlined_call_operand.vmem [shape: f32[1,128], index: 4, kind: input, shape index: {}]
  %s5 = inlined_call_operand.vmem [shape: f32[128,128], index: 5, kind: input, shape index: {}]
  %s6 = inlined_call_operand.vmem [shape: f32[1,128], index: 6, kind: input, shape index: {}]
  %s7 = inlined_call_operand.vmem [shape: f32[8,128], index: 7, kind: output, shape index: {}]
  %s8 = sld [smem:[#allocation0]]
  $region38: #{encoder_forward.1} parent=0
    _
  %s10 = ssub.s32 1, %s8
  %s11 = scalar_select 0, %s10, %s8
  // Predicated region
  $region2: #{encoder_forward.1} parent=0 // pred_check
    _
  $region3: #{encoder_forward.1} parent=0 // pred_check_branch
    %13 = sbr.rel (0) target = $region5
  $region4: #{encoder_forward.1} parent=0 // pred_region
    _
  $region5: #{encoder_forward.1} parent=0 // pred_fallthru
    _
  // Predicated region
  $region6: #{encoder_forward.1} parent=0 // pred_check
    _
  $region7: #{encoder_forward.1} parent=0 // pred_check_branch
    %15 = sbr.rel (0) target = $region9
  $region8: #{encoder_forward.1} parent=0 // pred_region
    _
  $region9: #{encoder_forward.1} parent=0 // pred_fallthru
    _
  // Predicated region
  $region10: #{encoder_forward.1} parent=0 // pred_check
    _
  $region11: #{encoder_forward.1} parent=0 // pred_check_branch
    %17 = sbr.rel (0) target = $region13
  $region12: #{encoder_forward.1} parent=0 // pred_region
    _
  $region13: #{encoder_forward.1} parent=0 // pred_fallthru
    _
  // Predicated region
  $region14: #{encoder_forward.1} parent=0 // pred_check
    _
  $region15: #{encoder_forward.1} parent=0 // pred_check_branch
    %19 = sbr.rel (0) target = $region17
  $region16: #{encoder_forward.1} parent=0 // pred_region
    _
  $region17: #{encoder_forward.1} parent=0 // pred_fallthru
    _
  // Predicated region
  $region18: #{encoder_forward.1} parent=0 // pred_check
    _
  $region19: #{encoder_forward.1} parent=0 // pred_check_branch
    %21 = sbr.rel (0) target = $region21
  $region20: #{encoder_forward.1} parent=0 // pred_region
    _
  $region21: #{encoder_forward.1} parent=0 // pred_fallthru
    _
  // Predicated region
  $region22: #{encoder_forward.1} parent=0 // pred_check
    _
  $region23: #{encoder_forward.1} parent=0 // pred_check_branch
    %23 = sbr.rel (0) target = $region25
  $region24: #{encoder_forward.1} parent=0 // pred_region
    _
  $region25: #{encoder_forward.1} parent=0 // pred_fallthru
    _
  // Predicated region
  $region26: #{encoder_forward.1} parent=0 // pred_check
    _
  $region27: #{encoder_forward.1} parent=0 // pred_check_branch
    %25 = sbr.rel (0) target = $region29
  $region28: #{encoder_forward.1} parent=0 // pred_region
    _
  $region29: #{encoder_forward.1} parent=0 // pred_fallthru
    _
  %v26 = vld [vmem:[%s0] sm:$0xff]
  %v27 = vld [vmem:[%s1] sm:$0xff]
  %v28 = vld [vmem:[%s1 + $0x8] sm:$0xff]
  %v29 = vld [vmem:[%s1 + $0x10] sm:$0xff]
  %v30 = vld [vmem:[%s1 + $0x18] sm:$0xff]
  %v31 = vld [vmem:[%s2] sm:$0x1]
  %v33 = vlaneseq
  %v34 = vshrl.u32 %v33, 7
  %v35 = vsub.s32 0, %v34
  %v36 = vrot.slane %v31, %v35
  %vm38 = vcmask 261120
  %v40 = vsel %vm38, %v26, 0
  %42 = vmatprep.subr.mxu0 0.0
  %43 = vmatpush1.msra.mxu0 0.0
  %44 = vmatprep.subr.mxu0 0.0
  %45 = vmatpush1.msra.mxu0 0.0
  %46 = vmatprep.subr.mxu0 0.0
  %47 = vmatpush1.msra.mxu0 0.0
  %48 = vmatprep.subr.mxu0 0.0
  %49 = vmatpush1.msra.mxu0 0.0
  %50 = vmatprep.subr.mxu0 0.0
  %51 = vmatpush1.msra.mxu0 0.0
  %52 = vmatprep.subr.mxu0 0.0
  %53 = vmatpush1.msra.mxu0 0.0
  %54 = vmatprep.subr.mxu0 0.0
  %55 = vmatpush1.msra.mxu0 0.0
  %56 = vmatprep.subr.mxu0 0.0
  %57 = vmatpush1.msra.mxu0 0.0
  %58 = vmatprep.subr.mxu0 0.0
  %59 = vmatpush1.msra.mxu0 0.0
  %60 = vmatprep.subr.mxu0 0.0
  %61 = vmatpush1.msra.mxu0 0.0
  %62 = vmatprep.subr.mxu0 0.0
  %63 = vmatpush1.msra.mxu0 0.0
  %64 = vmatprep.subr.mxu0 0.0
  %65 = vmatpush1.msra.mxu0 0.0
  %66 = vmatprep.subr.mxu0 0.0
  %67 = vmatpush1.msra.mxu0 %v30
  %68 = vmatprep.subr.mxu0 0.0
  %69 = vmatpush1.msra.mxu0 %v29
  %70 = vmatprep.subr.mxu0 0.0
  %71 = vmatpush1.msra.mxu0 %v28
  %72 = vmatprep.subr.mxu0 0.0
  %73 = vmatpush1.msra.mxu0 %v27
  %74 = vmatprep.subr.mxu0 0.0
  %75 = vmatpush2.msra.mxu0 0.0
  %76 = vmatprep.subr.mxu0 0.0
  %77 = vmatpush2.msra.mxu0 0.0
  %78 = vmatprep.subr.mxu0 0.0
  %79 = vmatpush2.msra.mxu0 0.0
  %80 = vmatprep.subr.mxu0 0.0
  %81 = vmatpush2.msra.mxu0 0.0
  %82 = vmatprep.subr.mxu0 0.0
  %83 = vmatpush2.msra.mxu0 0.0
  %84 = vmatprep.subr.mxu0 0.0
  %85 = vmatpush2.msra.mxu0 0.0
  %86 = vmatprep.subr.mxu0 0.0
  %87 = vmatpush2.msra.mxu0 0.0
  %88 = vmatprep.subr.mxu0 0.0
  %89 = vmatpush2.msra.mxu0 0.0
  %90 = vmatprep.subr.mxu0 0.0
  %91 = vmatpush2.msra.mxu0 0.0
  %92 = vmatprep.subr.mxu0 0.0
  %93 = vmatpush2.msra.mxu0 0.0
  %94 = vmatprep.subr.mxu0 0.0
  %95 = vmatpush2.msra.mxu0 0.0
  %96 = vmatprep.subr.mxu0 0.0
  %97 = vmatpush2.msra.mxu0 0.0
  %98 = vmatprep.subr.mxu0 0.0
  %99 = vmatpush2.msra.mxu0 0.0
  %100 = vmatprep.subr.mxu0 0.0
  %101 = vmatpush2.msra.mxu0 0.0
  %102 = vmatprep.subr.mxu0 0.0
  %103 = vmatpush2.msra.mxu0 0.0
  %104 = vmatprep.subr.mxu0 0.0
  %105 = vmatpush2.msra.mxu0 0.0
  %106 = vmatprep.mubr.f32.mxu0 0.0
  %107 = vmatmul.mubr.f32.gmra.mxu0 %v40
  %v108 = vpop.f32.mrf.mxu0
  %v109 = vadd.f32 %v36, %v108
  %v110 = vpop.f32.mrf.mxu0
  %111 = vdwg.mxu0
  %v112 = vtanh.pop %v109
  %v113 = vld [vmem:[%s3] sm:$0xff]
  %v114 = vld [vmem:[%s3 + $0x8] sm:$0xff]
  %v115 = vld [vmem:[%s3 + $0x10] sm:$0xff]
  %v116 = vld [vmem:[%s3 + $0x18] sm:$0xff]
  %v117 = vld [vmem:[%s3 + $0x20] sm:$0xff]
  %v118 = vld [vmem:[%s3 + $0x28] sm:$0xff]
  %v119 = vld [vmem:[%s3 + $0x30] sm:$0xff]
  %v120 = vld [vmem:[%s3 + $0x38] sm:$0xff]
  %v121 = vld [vmem:[%s3 + $0x40] sm:$0xff]
  %v122 = vld [vmem:[%s3 + $0x48] sm:$0xff]
  %v123 = vld [vmem:[%s3 + $0x50] sm:$0xff]
  %v124 = vld [vmem:[%s3 + $0x58] sm:$0xff]
  %v125 = vld [vmem:[%s3 + $0x60] sm:$0xff]
  %v126 = vld [vmem:[%s3 + $0x68] sm:$0xff]
  %v127 = vld [vmem:[%s3 + $0x70] sm:$0xff]
  %v128 = vld [vmem:[%s3 + $0x78] sm:$0xff]
  %v129 = vld [vmem:[%s4] sm:$0x1]
  %v131 = vlaneseq
  %v132 = vshrl.u32 %v131, 7
  %v133 = vsub.s32 0, %v132
  %v134 = vrot.slane %v129, %v133
  %136 = vmatprep.subr.mxu0 0.0
  %137 = vmatpush1.msra.mxu0 %v128
  %138 = vmatprep.subr.mxu0 0.0
  %139 = vmatpush1.msra.mxu0 %v127
  %140 = vmatprep.subr.mxu0 0.0
  %141 = vmatpush1.msra.mxu0 %v126
  %142 = vmatprep.subr.mxu0 0.0
  %143 = vmatpush1.msra.mxu0 %v125
  %144 = vmatprep.subr.mxu0 0.0
  %145 = vmatpush1.msra.mxu0 %v124
  %146 = vmatprep.subr.mxu0 0.0
  %147 = vmatpush1.msra.mxu0 %v123
  %148 = vmatprep.subr.mxu0 0.0
  %149 = vmatpush1.msra.mxu0 %v122
  %150 = vmatprep.subr.mxu0 0.0
  %151 = vmatpush1.msra.mxu0 %v121
  %152 = vmatprep.subr.mxu0 0.0
  %153 = vmatpush1.msra.mxu0 %v120
  %154 = vmatprep.subr.mxu0 0.0
  %155 = vmatpush1.msra.mxu0 %v119
  %156 = vmatprep.subr.mxu0 0.0
  %157 = vmatpush1.msra.mxu0 %v118
  %158 = vmatprep.subr.mxu0 0.0
  %159 = vmatpush1.msra.mxu0 %v117
  %160 = vmatprep.subr.mxu0 0.0
  %161 = vmatpush1.msra.mxu0 %v116
  %162 = vmatprep.subr.mxu0 0.0
  %163 = vmatpush1.msra.mxu0 %v115
  %164 = vmatprep.subr.mxu0 0.0
  %165 = vmatpush1.msra.mxu0 %v114
  %166 = vmatprep.subr.mxu0 0.0
  %167 = vmatpush1.msra.mxu0 %v113
  %168 = vmatprep.subr.mxu0 0.0
  %169 = vmatpush2.msra.mxu0 0.0
  %170 = vmatprep.subr.mxu0 0.0
  %171 = vmatpush2.msra.mxu0 0.0
  %172 = vmatprep.subr.mxu0 0.0
  %173 = vmatpush2.msra.mxu0 0.0
  %174 = vmatprep.subr.mxu0 0.0
  %175 = vmatpush2.msra.mxu0 0.0
  %176 = vmatprep.subr.mxu0 0.0
  %177 = vmatpush2.msra.mxu0 0.0
  %178 = vmatprep.subr.mxu0 0.0
  %179 = vmatpush2.msra.mxu0 0.0
  %180 = vmatprep.subr.mxu0 0.0
  %181 = vmatpush2.msra.mxu0 0.0
  %182 = vmatprep.subr.mxu0 0.0
  %183 = vmatpush2.msra.mxu0 0.0
  %184 = vmatprep.subr.mxu0 0.0
  %185 = vmatpush2.msra.mxu0 0.0
  %186 = vmatprep.subr.mxu0 0.0
  %187 = vmatpush2.msra.mxu0 0.0
  %188 = vmatprep.subr.mxu0 0.0
  %189 = vmatpush2.msra.mxu0 0.0
  %190 = vmatprep.subr.mxu0 0.0
  %191 = vmatpush2.msra.mxu0 0.0
  %192 = vmatprep.subr.mxu0 0.0
  %193 = vmatpush2.msra.mxu0 0.0
  %194 = vmatprep.subr.mxu0 0.0
  %195 = vmatpush2.msra.mxu0 0.0
  %196 = vmatprep.subr.mxu0 0.0
  %197 = vmatpush2.msra.mxu0 0.0
  %198 = vmatprep.subr.mxu0 0.0
  %199 = vmatpush2.msra.mxu0 0.0
  %200 = vmatprep.mubr.f32.mxu0 0.0
  %201 = vmatmul.mubr.f32.gmra.mxu0 %v112
  %v202 = vpop.f32.mrf.mxu0
  %v203 = vadd.f32 %v134, %v202
  %v204 = vpop.f32.mrf.mxu0
  %205 = vdwg.mxu0
  %v206 = vtanh.pop %v203
  %v207 = vld [vmem:[%s5] sm:$0xff]
  %v208 = vld [vmem:[%s5 + $0x8] sm:$0xff]
  %v209 = vld [vmem:[%s5 + $0x10] sm:$0xff]
  %v210 = vld [vmem:[%s5 + $0x18] sm:$0xff]
  %v211 = vld [vmem:[%s5 + $0x20] sm:$0xff]
  %v212 = vld [vmem:[%s5 + $0x28] sm:$0xff]
  %v213 = vld [vmem:[%s5 + $0x30] sm:$0xff]
  %v214 = vld [vmem:[%s5 + $0x38] sm:$0xff]
  %v215 = vld [vmem:[%s5 + $0x40] sm:$0xff]
  %v216 = vld [vmem:[%s5 + $0x48] sm:$0xff]
  %v217 = vld [vmem:[%s5 + $0x50] sm:$0xff]
  %v218 = vld [vmem:[%s5 + $0x58] sm:$0xff]
  %v219 = vld [vmem:[%s5 + $0x60] sm:$0xff]
  %v220 = vld [vmem:[%s5 + $0x68] sm:$0xff]
  %v221 = vld [vmem:[%s5 + $0x70] sm:$0xff]
  %v222 = vld [vmem:[%s5 + $0x78] sm:$0xff]
  %v223 = vld [vmem:[%s6] sm:$0x1]
  %v225 = vlaneseq
  %v226 = vshrl.u32 %v225, 7
  %v227 = vsub.s32 0, %v226
  %v228 = vrot.slane %v223, %v227
  %230 = vmatprep.subr.mxu0 0.0
  %231 = vmatpush1.msra.mxu0 %v222
  %232 = vmatprep.subr.mxu0 0.0
  %233 = vmatpush1.msra.mxu0 %v221
  %234 = vmatprep.subr.mxu0 0.0
  %235 = vmatpush1.msra.mxu0 %v220
  %236 = vmatprep.subr.mxu0 0.0
  %237 = vmatpush1.msra.mxu0 %v219
  %238 = vmatprep.subr.mxu0 0.0
  %239 = vmatpush1.msra.mxu0 %v218
  %240 = vmatprep.subr.mxu0 0.0
  %241 = vmatpush1.msra.mxu0 %v217
  %242 = vmatprep.subr.mxu0 0.0
  %243 = vmatpush1.msra.mxu0 %v216
  %244 = vmatprep.subr.mxu0 0.0
  %245 = vmatpush1.msra.mxu0 %v215
  %246 = vmatprep.subr.mxu0 0.0
  %247 = vmatpush1.msra.mxu0 %v214
  %248 = vmatprep.subr.mxu0 0.0
  %249 = vmatpush1.msra.mxu0 %v213
  %250 = vmatprep.subr.mxu0 0.0
  %251 = vmatpush1.msra.mxu0 %v212
  %252 = vmatprep.subr.mxu0 0.0
  %253 = vmatpush1.msra.mxu0 %v211
  %254 = vmatprep.subr.mxu0 0.0
  %255 = vmatpush1.msra.mxu0 %v210
  %256 = vmatprep.subr.mxu0 0.0
  %257 = vmatpush1.msra.mxu0 %v209
  %258 = vmatprep.subr.mxu0 0.0
  %259 = vmatpush1.msra.mxu0 %v208
  %260 = vmatprep.subr.mxu0 0.0
  %261 = vmatpush1.msra.mxu0 %v207
  %262 = vmatprep.subr.mxu0 0.0
  %263 = vmatpush2.msra.mxu0 0.0
  %264 = vmatprep.subr.mxu0 0.0
  %265 = vmatpush2.msra.mxu0 0.0
  %266 = vmatprep.subr.mxu0 0.0
  %267 = vmatpush2.msra.mxu0 0.0
  %268 = vmatprep.subr.mxu0 0.0
  %269 = vmatpush2.msra.mxu0 0.0
  %270 = vmatprep.subr.mxu0 0.0
  %271 = vmatpush2.msra.mxu0 0.0
  %272 = vmatprep.subr.mxu0 0.0
  %273 = vmatpush2.msra.mxu0 0.0
  %274 = vmatprep.subr.mxu0 0.0
  %275 = vmatpush2.msra.mxu0 0.0
  %276 = vmatprep.subr.mxu0 0.0
  %277 = vmatpush2.msra.mxu0 0.0
  %278 = vmatprep.subr.mxu0 0.0
  %279 = vmatpush2.msra.mxu0 0.0
  %280 = vmatprep.subr.mxu0 0.0
  %281 = vmatpush2.msra.mxu0 0.0
  %282 = vmatprep.subr.mxu0 0.0
  %283 = vmatpush2.msra.mxu0 0.0
  %284 = vmatprep.subr.mxu0 0.0
  %285 = vmatpush2.msra.mxu0 0.0
  %286 = vmatprep.subr.mxu0 0.0
  %287 = vmatpush2.msra.mxu0 0.0
  %288 = vmatprep.subr.mxu0 0.0
  %289 = vmatpush2.msra.mxu0 0.0
  %290 = vmatprep.subr.mxu0 0.0
  %291 = vmatpush2.msra.mxu0 0.0
  %292 = vmatprep.subr.mxu0 0.0
  %293 = vmatpush2.msra.mxu0 0.0
  %294 = vmatprep.mubr.f32.mxu0 0.0
  %295 = vmatmul.mubr.f32.gmra.mxu0 %v206
  %v296 = vpop.f32.mrf.mxu0
  %v297 = vadd.f32 %v228, %v296
  %v298 = vpop.f32.mrf.mxu0
  %299 = vdwg.mxu0
  %300 = vst [vmem:[%s7] sm:$0xff] %v297
  // Predicated region
  $region30: #{encoder_forward.1} parent=0 // pred_check
    _
  $region31: #{encoder_forward.1} parent=0 // pred_check_branch
    %302 = sbr.rel (0) target = $region33
  $region32: #{encoder_forward.1} parent=0 // pred_region
    _
  $region33: #{encoder_forward.1} parent=0 // pred_fallthru
    _
  // Predicated region
  $region34: #{encoder_forward.1} parent=0 // pred_check
    _
  $region35: #{encoder_forward.1} parent=0 // pred_check_branch
    %304 = sbr.rel (0) target = $region37
  $region36: #{encoder_forward.1} parent=0 // pred_region
    _
  $region37: #{encoder_forward.1} parent=0 // pred_fallthru
    _

</llo_original>
